<compile_context>
chip_gen: v5e
topology: v5e:2x2
jax: 0.10.0
libtpu: 0.0.40
codegen_flags: <defaults>
</compile_context>

<pallas_src>
import functools

import jax
import jax.numpy as jnp
from jax import lax
from jax.experimental import pallas as pl
from jax.experimental.pallas import tpu as pltpu


LANE = 128  # TPU lane width; classifier output dim is padded to a multiple.


def _round_up(x: int, m: int) -> int:
    return ((x + m - 1) // m) * m


# ---------------------------------------------------------------------------
# Pallas kernel: fused ODE-RNN integration + linear classifier head
# (one batch tile per grid step; weights stay VMEM-resident across the grid)
# ---------------------------------------------------------------------------
def _connectome_ode_classifier_kernel(
    x_ref,      # [BT, F]      bf16  flattened input tile
    wih_ref,    # [F, N]       bf16  input -> neurons projection
    brnn_ref,   # [1, N]       f32   pre-summed b_ih + b_hh
    whh_ref,    # [N, N]       bf16  recurrent (connectome) weights
    w1_ref,     # [N, FC]      bf16  classifier fc1
    b1_ref,     # [1, FC]      f32
    w2_ref,     # [FC, Cpad]   bf16  classifier fc2 (classes padded to 128k)
    b2_ref,     # [1, Cpad]    f32
    out_ref,    # [BT, Cpad]   f32   padded logits tile
    *,
    num_evals: int,
    start_time: float,
    end_time: float,
    unroll: int,
):
    x = x_ref[...]  # bf16

    # Input drive is constant over the ODE integration: compute it once (MXU,
    # bf16 inputs, f32 accumulate) with the fused RNN bias folded in, so the
    # Euler loop carries no redundant broadcasts / adds.
    drive = (
        jnp.dot(x, wih_ref[...], preferred_element_type=jnp.float32)
        + brnn_ref[...]
    )

    bt = x.shape[0]
    n_neurons = whh_ref.shape[0]

    # Trace-time constants (no per-step scalar work).
    dt = float(end_time - start_time) / float(num_evals)
    one_minus_dt = 1.0 - dt

    # Load W_hh once; it is loop-invariant across all Euler steps.
    whh = whh_ref[...]  # bf16

    h0 = jnp.zeros((bt, n_neurons), dtype=jnp.float32)

    def euler_step(_, h):
        # MXU: bf16 inputs, f32 accumulation. Elementwise stays f32.
        pre = drive + jnp.dot(
            h.astype(jnp.bfloat16), whh, preferred_element_type=jnp.float32
        )
        # Fused leaky-Euler update: h + dt * (-h + tanh(pre)).
        return one_minus_dt * h + dt * jnp.tanh(pre)

    # Fixed-step Euler over the ODE time grid. Partial unroll keeps LLO
    # scheduler visibility without code-size blowup for large num_evals.
    h_final = lax.fori_loop(0, num_evals, euler_step, h0, unroll=unroll)

    # Classifier head on the last timestep (loss_all_timesteps=False):
    # Flatten(1) is a no-op here (hidden already [BT, N]).
    z = (
        jnp.dot(
            h_final.astype(jnp.bfloat16),
            w1_ref[...],
            preferred_element_type=jnp.float32,
        )
        + b1_ref[...]
    )
    z = jnp.maximum(z, 0.0)  # ReLU
    # nn.Dropout in eval mode == identity.
    logits = (
        jnp.dot(
            z.astype(jnp.bfloat16),
            w2_ref[...],
            preferred_element_type=jnp.float32,
        )
        + b2_ref[...]
    )
    # Lane-dense [BT, Cpad] store (unmasked vst; BT is a sublane multiple).
    out_ref[...] = logits.astype(out_ref.dtype)


# ---------------------------------------------------------------------------
# Wrapper
# ---------------------------------------------------------------------------
def connectome_ode_classifier(
    x_img,          # [B, C, H, W]  (NCHW, PyTorch convention)
    params,         # dict of f32 weights (see init_params)
    *,
    num_evals: int,
    start_time: float = 0.0,
    end_time: float = 1.0,
):
    b = x_img.shape[0]
    # nn.Flatten(1) for 4-D input; cast to bf16 for the MXU.
    x = x_img.reshape(b, -1).astype(jnp.bfloat16)
    feat = x.shape[1]

    # --- batch tiling: pad batch to a multiple of the batch tile (>= 8
    # sublanes for f32 intermediates, up to 128 rows to fill the MXU) and run
    # a 1-D grid over batch tiles. ---
    bt = min(128, _round_up(b, 8))
    b_pad = _round_up(b, bt)
    n_tiles = b_pad // bt
    if b_pad != b:
        x = jnp.pad(x, ((0, b_pad - b), (0, 0)))

    # Matmul operands in bf16; biases stay f32.
    wih = params["w_ih"].astype(jnp.bfloat16)
    whh = params["w_hh"].astype(jnp.bfloat16)
    w1 = params["fc1_w"].astype(jnp.bfloat16)
    # Pre-sum the two RNN biases (one fewer DMA + VPU add in-kernel).
    b_rnn = params["b_ih"] + params["b_hh"]
    b1 = params["fc1_b"]

    n_neurons = whh.shape[0]
    fc_dim, num_classes = params["fc2_w"].shape
    # Pad the classifier output dimension to a multiple of 128 lanes so the
    # final store is lane-dense and fc2's N is a multiple of the MXU tile.
    c_pad = _round_up(num_classes, LANE)
    w2 = (
        jnp.zeros((fc_dim, c_pad), jnp.float32)
        .at[:, :num_classes]
        .set(params["fc2_w"])
        .astype(jnp.bfloat16)
    )
    b2 = (
        jnp.zeros((1, c_pad), jnp.float32)
        .at[:, :num_classes]
        .set(params["fc2_b"])
    )

    kernel = functools.partial(
        _connectome_ode_classifier_kernel,
        num_evals=num_evals,
        start_time=start_time,
        end_time=end_time,
        unroll=min(num_evals, 8),
    )

    # Per-tile x / out auto-pipeline over the batch grid; weight / bias specs
    # use a constant index_map so they are DMA'd once and stay VMEM-resident.
    const2d = lambda shape: pl.BlockSpec(shape, lambda i: (0, 0))  # noqa: E731

    flops = (
        2 * b_pad * feat * n_neurons
        + num_evals * 2 * b_pad * n_neurons * n_neurons
        + 2 * b_pad * n_neurons * fc_dim
        + 2 * b_pad * fc_dim * c_pad
    )
    bytes_accessed = (
        b_pad * feat * 2
        + feat * n_neurons * 2
        + n_neurons * n_neurons * 2
        + n_neurons * fc_dim * 2
        + fc_dim * c_pad * 2
        + (n_neurons + fc_dim + c_pad) * 4
        + b_pad * c_pad * 4
    )

    out_padded = pl.pallas_call(
        kernel,
        out_shape=jax.ShapeDtypeStruct((b_pad, c_pad), jnp.float32),
        grid=(n_tiles,),
        in_specs=[
            pl.BlockSpec((bt, feat), lambda i: (i, 0)),        # x (per-tile)
            const2d((feat, n_neurons)),                        # w_ih (resident)
            const2d((1, n_neurons)),                           # b_ih + b_hh
            const2d((n_neurons, n_neurons)),                   # w_hh (resident)
            const2d((n_neurons, fc_dim)),                      # fc1_w (resident)
            const2d((1, fc_dim)),                              # fc1_b
            const2d((fc_dim, c_pad)),                          # fc2_w (resident)
            const2d((1, c_pad)),                               # fc2_b
        ],
        out_specs=pl.BlockSpec((bt, c_pad), lambda i: (i, 0)),
        compiler_params=pltpu.CompilerParams(
            # Batch tiles are independent: shard across v7x's 2 TensorCores.
            dimension_semantics=("parallel",),
        ),
        cost_estimate=pl.CostEstimate(
            flops=flops,
            transcendentals=num_evals * b_pad * n_neurons,
            bytes_accessed=bytes_accessed,
        ),
    )(x, wih, b_rnn, whh, w1, b1, w2, b2)

    # Strip batch and lane padding back to the true shapes.
    return out_padded[:b, :num_classes]


# ---------------------------------------------------------------------------
# Deterministic parameter init (PyTorch-style uniform(-1/sqrt(fan_in), ...))
# ---------------------------------------------------------------------------
def init_params(key, input_size, num_neurons, fc_dim, num_classes):
    ks = jax.random.split(key, 8)

    def unif(k, shape, fan_in):
        bound = 1.0 / jnp.sqrt(jnp.float32(fan_in))
        return jax.random.uniform(
            k, shape, dtype=jnp.float32, minval=-bound, maxval=bound
        )

    return {
        # RNN / connectome weights (stored [in, out]).
        "w_ih": unif(ks[0], (input_size, num_neurons), input_size),
        "b_ih": unif(ks[1], (1, num_neurons), input_size),
        "w_hh": unif(ks[2], (num_neurons, num_neurons), num_neurons),
        "b_hh": unif(ks[3], (1, num_neurons), num_neurons),
        # Classifier head.
        "fc1_w": unif(ks[4], (num_neurons, fc_dim), num_neurons),
        "fc1_b": unif(ks[5], (1, fc_dim), num_neurons),
        "fc2_w": unif(ks[6], (fc_dim, num_classes), fc_dim),
        "fc2_b": unif(ks[7], (1, num_classes), fc_dim),
    }


# ---------------------------------------------------------------------------
# References (no Pallas) for sanity checks
# ---------------------------------------------------------------------------
def reference_bf16(x_img, params, *, num_evals, start_time=0.0, end_time=1.0):
    """Same math as the kernel: bf16 matmul inputs, f32 accumulate/elementwise."""
    b = x_img.shape[0]
    x = x_img.reshape(b, -1).astype(jnp.bfloat16)
    wih = params["w_ih"].astype(jnp.bfloat16)
    whh = params["w_hh"].astype(jnp.bfloat16)
    w1 = params["fc1_w"].astype(jnp.bfloat16)
    w2 = params["fc2_w"].astype(jnp.bfloat16)

    drive = (
        jnp.dot(x, wih, preferred_element_type=jnp.float32)
        + (params["b_ih"] + params["b_hh"])
    )
    dt = (end_time - start_time) / num_evals
    h = jnp.zeros((b, params["w_hh"].shape[0]), jnp.float32)
    for _ in range(num_evals):
        pre = drive + jnp.dot(
            h.astype(jnp.bfloat16), whh, preferred_element_type=jnp.float32
        )
        h = (1.0 - dt) * h + dt * jnp.tanh(pre)
    z = jnp.maximum(
        jnp.dot(h.astype(jnp.bfloat16), w1, preferred_element_type=jnp.float32)
        + params["fc1_b"],
        0.0,
    )
    return (
        jnp.dot(z.astype(jnp.bfloat16), w2, preferred_element_type=jnp.float32)
        + params["fc2_b"]
    )


def reference_f32(x_img, params, *, num_evals, start_time=0.0, end_time=1.0):
    """Pure-f32 reference of the original forward math (loose check only)."""
    b = x_img.shape[0]
    x = x_img.reshape(b, -1).astype(jnp.float32)
    drive = x @ params["w_ih"] + params["b_ih"]
    dt = (end_time - start_time) / num_evals
    h = jnp.zeros((b, params["w_hh"].shape[0]), jnp.float32)
    for _ in range(num_evals):
        pre = drive + h @ params["w_hh"] + params["b_hh"]
        h = h + dt * (-h + jnp.tanh(pre))
    z = jnp.maximum(h @ params["fc1_w"] + params["fc1_b"], 0.0)
    return z @ params["fc2_w"] + params["fc2_b"]


if __name__ == "__main__":
    # Small shapes consistent with the module's forward:
    #   x: [batch=2, channels=4, H=16, W=16]  -> flatten(1) -> [2, 1024]
    B, C, Himg, Wimg = 2, 4, 16, 16
    NUM_NEURONS = 128   # connectome size (rnn.output_size)
    FC_DIM = 128
    NUM_CLASSES = 10
    NUM_EVALS = 8

    key = jax.random.PRNGKey(0)
    k_x, k_p = jax.random.split(key)

    x = jax.random.normal(k_x, (B, C, Himg, Wimg), dtype=jnp.float32)
    params = init_params(k_p, C * Himg * Wimg, NUM_NEURONS, FC_DIM, NUM_CLASSES)

    pred = connectome_ode_classifier(
        x, params, num_evals=NUM_EVALS, start_time=0.0, end_time=1.0
    )
    pred = jax.block_until_ready(pred)

    assert pred.shape == (B, NUM_CLASSES)

    # Tight check against a reference that uses identical bf16-matmul math.
    ref_bf16 = reference_bf16(x, params, num_evals=NUM_EVALS)
    assert jnp.allclose(pred, ref_bf16, atol=2e-3, rtol=2e-2), (
        float(jnp.max(jnp.abs(pred - ref_bf16)))
    )

    # Loose check against the pure-f32 forward (bf16 matmul inputs introduce
    # ~1e-3-scale absolute differences at these magnitudes).
    ref_f32 = reference_f32(x, params, num_evals=NUM_EVALS)
    assert jnp.allclose(pred, ref_f32, atol=5e-2, rtol=5e-2), (
        float(jnp.max(jnp.abs(pred - ref_f32)))
    )

    print("KERNEL_OK")
</pallas_src>

<mosaic_0001>
module attributes {stable_mosaic.version = 11 : i64} {
  func.func @_connectome_ode_classifier_kernel(%arg0: i32, %arg1: memref<8x1024xbf16, #tpu.memory_space<vmem>>, %arg2: memref<1024x128xbf16, #tpu.memory_space<vmem>>, %arg3: memref<1x128xf32, #tpu.memory_space<vmem>>, %arg4: memref<128x128xbf16, #tpu.memory_space<vmem>>, %arg5: memref<128x128xbf16, #tpu.memory_space<vmem>>, %arg6: memref<1x128xf32, #tpu.memory_space<vmem>>, %arg7: memref<128x128xbf16, #tpu.memory_space<vmem>>, %arg8: memref<1x128xf32, #tpu.memory_space<vmem>>, %arg9: memref<8x128xf32, #tpu.memory_space<vmem>>) attributes {dimension_semantics = [#tpu.dimension_semantics<parallel>], iteration_bounds = array<i64: 1>, scalar_prefetch = 0 : i64, scratch_operands = 0 : i64, tpu.core_type = #tpu.core_type<tc>, window_params = [{transform_indices = @transform_0, window_bounds = array<i64: 8, 1024>}, {pipeline_mode = #tpu.pipeline_mode<synchronous>, transform_indices = @transform_1, window_bounds = array<i64: 1024, 128>}, {pipeline_mode = #tpu.pipeline_mode<synchronous>, transform_indices = @transform_2, window_bounds = array<i64: 1, 128>}, {pipeline_mode = #tpu.pipeline_mode<synchronous>, transform_indices = @transform_3, window_bounds = array<i64: 128, 128>}, {pipeline_mode = #tpu.pipeline_mode<synchronous>, transform_indices = @transform_4, window_bounds = array<i64: 128, 128>}, {pipeline_mode = #tpu.pipeline_mode<synchronous>, transform_indices = @transform_5, window_bounds = array<i64: 1, 128>}, {pipeline_mode = #tpu.pipeline_mode<synchronous>, transform_indices = @transform_6, window_bounds = array<i64: 128, 128>}, {pipeline_mode = #tpu.pipeline_mode<synchronous>, transform_indices = @transform_7, window_bounds = array<i64: 1, 128>}, {transform_indices = @transform_8, window_bounds = array<i64: 8, 128>}]} {
    %c0 = arith.constant 0 : index
    %c0_0 = arith.constant 0 : index
    %0 = vector.load %arg1[%c0, %c0_0] : memref<8x1024xbf16, #tpu.memory_space<vmem>>, vector<8x1024xbf16>
    %c0_1 = arith.constant 0 : index
    %c0_2 = arith.constant 0 : index
    %1 = vector.load %arg2[%c0_1, %c0_2] : memref<1024x128xbf16, #tpu.memory_space<vmem>>, vector<1024x128xbf16>
    %cst = arith.constant dense<0.000000e+00> : vector<8x128xf32>
    %2 = tpu.matmul %0, %1, %cst {dimension_numbers = #tpu.dot_dimension_numbers<[1], [0], [0], [1], [0, 0, 1, 1], [], []>} : vector<8x1024xbf16>, vector<1024x128xbf16>, vector<8x128xf32> -> vector<8x128xf32>
    %c0_3 = arith.constant 0 : index
    %c0_4 = arith.constant 0 : index
    %3 = vector.load %arg3[%c0_3, %c0_4] : memref<1x128xf32, #tpu.memory_space<vmem>>, vector<1x128xf32>
    %4 = vector.broadcast %3 : vector<1x128xf32> to vector<8x128xf32>
    %5 = arith.addf %2, %4 : vector<8x128xf32>
    %c0_5 = arith.constant 0 : index
    %c0_6 = arith.constant 0 : index
    %6 = vector.load %arg4[%c0_5, %c0_6] : memref<128x128xbf16, #tpu.memory_space<vmem>>, vector<128x128xbf16>
    %cst_7 = arith.constant 0.000000e+00 : f32
    %7 = vector.broadcast %cst_7 : f32 to vector<8x128xf32>
    %c0_i32 = arith.constant 0 : i32
    %8 = arith.truncf %7 : vector<8x128xf32> to vector<8x128xbf16>
    %cst_8 = arith.constant dense<0.000000e+00> : vector<8x128xf32>
    %9 = tpu.matmul %8, %6, %cst_8 {dimension_numbers = #tpu.dot_dimension_numbers<[1], [0], [0], [1], [0, 0, 1, 1], [], []>} : vector<8x128xbf16>, vector<128x128xbf16>, vector<8x128xf32> -> vector<8x128xf32>
    %10 = arith.addf %5, %9 : vector<8x128xf32>
    %cst_9 = arith.constant 8.750000e-01 : f32
    %11 = vector.broadcast %cst_9 : f32 to vector<8x128xf32>
    %12 = arith.mulf %11, %7 : vector<8x128xf32>
    %13 = math.tanh %10 : vector<8x128xf32>
    %cst_10 = arith.constant 1.250000e-01 : f32
    %14 = vector.broadcast %cst_10 : f32 to vector<8x128xf32>
    %15 = arith.mulf %14, %13 : vector<8x128xf32>
    %16 = arith.addf %12, %15 : vector<8x128xf32>
    %c1_i32 = arith.constant 1 : i32
    %17 = arith.truncf %16 : vector<8x128xf32> to vector<8x128xbf16>
    %cst_11 = arith.constant dense<0.000000e+00> : vector<8x128xf32>
    %18 = tpu.matmul %17, %6, %cst_11 {dimension_numbers = #tpu.dot_dimension_numbers<[1], [0], [0], [1], [0, 0, 1, 1], [], []>} : vector<8x128xbf16>, vector<128x128xbf16>, vector<8x128xf32> -> vector<8x128xf32>
    %19 = arith.addf %5, %18 : vector<8x128xf32>
    %cst_12 = arith.constant 8.750000e-01 : f32
    %20 = vector.broadcast %cst_12 : f32 to vector<8x128xf32>
    %21 = arith.mulf %20, %16 : vector<8x128xf32>
    %22 = math.tanh %19 : vector<8x128xf32>
    %cst_13 = arith.constant 1.250000e-01 : f32
    %23 = vector.broadcast %cst_13 : f32 to vector<8x128xf32>
    %24 = arith.mulf %23, %22 : vector<8x128xf32>
    %25 = arith.addf %21, %24 : vector<8x128xf32>
    %c2_i32 = arith.constant 2 : i32
    %26 = arith.truncf %25 : vector<8x128xf32> to vector<8x128xbf16>
    %cst_14 = arith.constant dense<0.000000e+00> : vector<8x128xf32>
    %27 = tpu.matmul %26, %6, %cst_14 {dimension_numbers = #tpu.dot_dimension_numbers<[1], [0], [0], [1], [0, 0, 1, 1], [], []>} : vector<8x128xbf16>, vector<128x128xbf16>, vector<8x128xf32> -> vector<8x128xf32>
    %28 = arith.addf %5, %27 : vector<8x128xf32>
    %cst_15 = arith.constant 8.750000e-01 : f32
    %29 = vector.broadcast %cst_15 : f32 to vector<8x128xf32>
    %30 = arith.mulf %29, %25 : vector<8x128xf32>
    %31 = math.tanh %28 : vector<8x128xf32>
    %cst_16 = arith.constant 1.250000e-01 : f32
    %32 = vector.broadcast %cst_16 : f32 to vector<8x128xf32>
    %33 = arith.mulf %32, %31 : vector<8x128xf32>
    %34 = arith.addf %30, %33 : vector<8x128xf32>
    %c3_i32 = arith.constant 3 : i32
    %35 = arith.truncf %34 : vector<8x128xf32> to vector<8x128xbf16>
    %cst_17 = arith.constant dense<0.000000e+00> : vector<8x128xf32>
    %36 = tpu.matmul %35, %6, %cst_17 {dimension_numbers = #tpu.dot_dimension_numbers<[1], [0], [0], [1], [0, 0, 1, 1], [], []>} : vector<8x128xbf16>, vector<128x128xbf16>, vector<8x128xf32> -> vector<8x128xf32>
    %37 = arith.addf %5, %36 : vector<8x128xf32>
    %cst_18 = arith.constant 8.750000e-01 : f32
    %38 = vector.broadcast %cst_18 : f32 to vector<8x128xf32>
    %39 = arith.mulf %38, %34 : vector<8x128xf32>
    %40 = math.tanh %37 : vector<8x128xf32>
    %cst_19 = arith.constant 1.250000e-01 : f32
    %41 = vector.broadcast %cst_19 : f32 to vector<8x128xf32>
    %42 = arith.mulf %41, %40 : vector<8x128xf32>
    %43 = arith.addf %39, %42 : vector<8x128xf32>
    %c4_i32 = arith.constant 4 : i32
    %44 = arith.truncf %43 : vector<8x128xf32> to vector<8x128xbf16>
    %cst_20 = arith.constant dense<0.000000e+00> : vector<8x128xf32>
    %45 = tpu.matmul %44, %6, %cst_20 {dimension_numbers = #tpu.dot_dimension_numbers<[1], [0], [0], [1], [0, 0, 1, 1], [], []>} : vector<8x128xbf16>, vector<128x128xbf16>, vector<8x128xf32> -> vector<8x128xf32>
    %46 = arith.addf %5, %45 : vector<8x128xf32>
    %cst_21 = arith.constant 8.750000e-01 : f32
    %47 = vector.broadcast %cst_21 : f32 to vector<8x128xf32>
    %48 = arith.mulf %47, %43 : vector<8x128xf32>
    %49 = math.tanh %46 : vector<8x128xf32>
    %cst_22 = arith.constant 1.250000e-01 : f32
    %50 = vector.broadcast %cst_22 : f32 to vector<8x128xf32>
    %51 = arith.mulf %50, %49 : vector<8x128xf32>
    %52 = arith.addf %48, %51 : vector<8x128xf32>
    %c5_i32 = arith.constant 5 : i32
    %53 = arith.truncf %52 : vector<8x128xf32> to vector<8x128xbf16>
    %cst_23 = arith.constant dense<0.000000e+00> : vector<8x128xf32>
    %54 = tpu.matmul %53, %6, %cst_23 {dimension_numbers = #tpu.dot_dimension_numbers<[1], [0], [0], [1], [0, 0, 1, 1], [], []>} : vector<8x128xbf16>, vector<128x128xbf16>, vector<8x128xf32> -> vector<8x128xf32>
    %55 = arith.addf %5, %54 : vector<8x128xf32>
    %cst_24 = arith.constant 8.750000e-01 : f32
    %56 = vector.broadcast %cst_24 : f32 to vector<8x128xf32>
    %57 = arith.mulf %56, %52 : vector<8x128xf32>
    %58 = math.tanh %55 : vector<8x128xf32>
    %cst_25 = arith.constant 1.250000e-01 : f32
    %59 = vector.broadcast %cst_25 : f32 to vector<8x128xf32>
    %60 = arith.mulf %59, %58 : vector<8x128xf32>
    %61 = arith.addf %57, %60 : vector<8x128xf32>
    %c6_i32 = arith.constant 6 : i32
    %62 = arith.truncf %61 : vector<8x128xf32> to vector<8x128xbf16>
    %cst_26 = arith.constant dense<0.000000e+00> : vector<8x128xf32>
    %63 = tpu.matmul %62, %6, %cst_26 {dimension_numbers = #tpu.dot_dimension_numbers<[1], [0], [0], [1], [0, 0, 1, 1], [], []>} : vector<8x128xbf16>, vector<128x128xbf16>, vector<8x128xf32> -> vector<8x128xf32>
    %64 = arith.addf %5, %63 : vector<8x128xf32>
    %cst_27 = arith.constant 8.750000e-01 : f32
    %65 = vector.broadcast %cst_27 : f32 to vector<8x128xf32>
    %66 = arith.mulf %65, %61 : vector<8x128xf32>
    %67 = math.tanh %64 : vector<8x128xf32>
    %cst_28 = arith.constant 1.250000e-01 : f32
    %68 = vector.broadcast %cst_28 : f32 to vector<8x128xf32>
    %69 = arith.mulf %68, %67 : vector<8x128xf32>
    %70 = arith.addf %66, %69 : vector<8x128xf32>
    %c7_i32 = arith.constant 7 : i32
    %71 = arith.truncf %70 : vector<8x128xf32> to vector<8x128xbf16>
    %cst_29 = arith.constant dense<0.000000e+00> : vector<8x128xf32>
    %72 = tpu.matmul %71, %6, %cst_29 {dimension_numbers = #tpu.dot_dimension_numbers<[1], [0], [0], [1], [0, 0, 1, 1], [], []>} : vector<8x128xbf16>, vector<128x128xbf16>, vector<8x128xf32> -> vector<8x128xf32>
    %73 = arith.addf %5, %72 : vector<8x128xf32>
    %cst_30 = arith.constant 8.750000e-01 : f32
    %74 = vector.broadcast %cst_30 : f32 to vector<8x128xf32>
    %75 = arith.mulf %74, %70 : vector<8x128xf32>
    %76 = math.tanh %73 : vector<8x128xf32>
    %cst_31 = arith.constant 1.250000e-01 : f32
    %77 = vector.broadcast %cst_31 : f32 to vector<8x128xf32>
    %78 = arith.mulf %77, %76 : vector<8x128xf32>
    %79 = arith.addf %75, %78 : vector<8x128xf32>
    %80 = arith.truncf %79 : vector<8x128xf32> to vector<8x128xbf16>
    %c0_32 = arith.constant 0 : index
    %c0_33 = arith.constant 0 : index
    %81 = vector.load %arg5[%c0_32, %c0_33] : memref<128x128xbf16, #tpu.memory_space<vmem>>, vector<128x128xbf16>
    %cst_34 = arith.constant dense<0.000000e+00> : vector<8x128xf32>
    %82 = tpu.matmul %80, %81, %cst_34 {dimension_numbers = #tpu.dot_dimension_numbers<[1], [0], [0], [1], [0, 0, 1, 1], [], []>} : vector<8x128xbf16>, vector<128x128xbf16>, vector<8x128xf32> -> vector<8x128xf32>
    %c0_35 = arith.constant 0 : index
    %c0_36 = arith.constant 0 : index
    %83 = vector.load %arg6[%c0_35, %c0_36] : memref<1x128xf32, #tpu.memory_space<vmem>>, vector<1x128xf32>
    %84 = vector.broadcast %83 : vector<1x128xf32> to vector<8x128xf32>
    %85 = arith.addf %82, %84 : vector<8x128xf32>
    %cst_37 = arith.constant 0.000000e+00 : f32
    %86 = vector.broadcast %cst_37 : f32 to vector<8x128xf32>
    %87 = arith.maximumf %85, %86 : vector<8x128xf32>
    %88 = arith.truncf %87 : vector<8x128xf32> to vector<8x128xbf16>
    %c0_38 = arith.constant 0 : index
    %c0_39 = arith.constant 0 : index
    %89 = vector.load %arg7[%c0_38, %c0_39] : memref<128x128xbf16, #tpu.memory_space<vmem>>, vector<128x128xbf16>
    %cst_40 = arith.constant dense<0.000000e+00> : vector<8x128xf32>
    %90 = tpu.matmul %88, %89, %cst_40 {dimension_numbers = #tpu.dot_dimension_numbers<[1], [0], [0], [1], [0, 0, 1, 1], [], []>} : vector<8x128xbf16>, vector<128x128xbf16>, vector<8x128xf32> -> vector<8x128xf32>
    %c0_41 = arith.constant 0 : index
    %c0_42 = arith.constant 0 : index
    %91 = vector.load %arg8[%c0_41, %c0_42] : memref<1x128xf32, #tpu.memory_space<vmem>>, vector<1x128xf32>
    %92 = vector.broadcast %91 : vector<1x128xf32> to vector<8x128xf32>
    %93 = arith.addf %90, %92 : vector<8x128xf32>
    %c0_43 = arith.constant 0 : index
    %c0_44 = arith.constant 0 : index
    %94 = vector.load %arg9[%c0_43, %c0_44] : memref<8x128xf32, #tpu.memory_space<vmem>>, vector<8x128xf32>
    tpu.vector_store %arg9[%c0_43, %c0_44], %93 {strides = array<i32>} : memref<8x128xf32, #tpu.memory_space<vmem>>, vector<8x128xf32>,
    return
  }
  func.func @transform_0(%arg0: i32) -> (i32, i32) {
    %c0_i32 = arith.constant 0 : i32
    %c0_i32_0 = arith.constant 0 : i32
    return %arg0, %c0_i32 : i32, i32
  }
  func.func @transform_1(%arg0: i32) -> (i32, i32) {
    %c0_i32 = arith.constant 0 : i32
    %c0_i32_0 = arith.constant 0 : i32
    %c0_i32_1 = arith.constant 0 : i32
    return %c0_i32, %c0_i32_0 : i32, i32
  }
  func.func @transform_2(%arg0: i32) -> (i32, i32) {
    %c0_i32 = arith.constant 0 : i32
    %c0_i32_0 = arith.constant 0 : i32
    %c0_i32_1 = arith.constant 0 : i32
    return %c0_i32, %c0_i32_0 : i32, i32
  }
  func.func @transform_3(%arg0: i32) -> (i32, i32) {
    %c0_i32 = arith.constant 0 : i32
    %c0_i32_0 = arith.constant 0 : i32
    %c0_i32_1 = arith.constant 0 : i32
    return %c0_i32, %c0_i32_0 : i32, i32
  }
  func.func @transform_4(%arg0: i32) -> (i32, i32) {
    %c0_i32 = arith.constant 0 : i32
    %c0_i32_0 = arith.constant 0 : i32
    %c0_i32_1 = arith.constant 0 : i32
    return %c0_i32, %c0_i32_0 : i32, i32
  }
  func.func @transform_5(%arg0: i32) -> (i32, i32) {
    %c0_i32 = arith.constant 0 : i32
    %c0_i32_0 = arith.constant 0 : i32
    %c0_i32_1 = arith.constant 0 : i32
    return %c0_i32, %c0_i32_0 : i32, i32
  }
  func.func @transform_6(%arg0: i32) -> (i32, i32) {
    %c0_i32 = arith.constant 0 : i32
    %c0_i32_0 = arith.constant 0 : i32
    %c0_i32_1 = arith.constant 0 : i32
    return %c0_i32, %c0_i32_0 : i32, i32
  }
  func.func @transform_7(%arg0: i32) -> (i32, i32) {
    %c0_i32 = arith.constant 0 : i32
    %c0_i32_0 = arith.constant 0 : i32
    %c0_i32_1 = arith.constant 0 : i32
    return %c0_i32, %c0_i32_0 : i32, i32
  }
  func.func @transform_8(%arg0: i32) -> (i32, i32) {
    %c0_i32 = arith.constant 0 : i32
    %c0_i32_0 = arith.constant 0 : i32
    return %arg0, %c0_i32 : i32, i32
  }
}

</mosaic_0001>

<llo_original>
// kernel: tpu_custom_call.1
$region0: #{tpu_custom_call.1}
  #allocation0 [shape = 'u32[]', space=smem, size = 0x4, offset = 0x4, fixed_abs, tag = 'smem constant byte address 0x4 - core index']
  #allocation1 [shape = 'u32[72,128]{1,0:T(1,128)}', space=vmem, size = 0x9000, scoped, tag = 'internal scratch']
  %s0 = inlined_call_operand.hbm [shape: bf16[8,1024], index: 0, kind: input, shape index: {}]
  %s1 = inlined_call_operand.hbm [shape: bf16[1024,128], index: 1, kind: input, shape index: {}]
  %s2 = inlined_call_operand.vmem [shape: f32[1,128], index: 2, kind: input, shape index: {}]
  %s3 = inlined_call_operand.hbm [shape: bf16[128,128], index: 3, kind: input, shape index: {}]
  %s4 = inlined_call_operand.hbm [shape: bf16[128,128], index: 4, kind: input, shape index: {}]
  %s5 = inlined_call_operand.vmem [shape: f32[1,128], index: 5, kind: input, shape index: {}]
  %s6 = inlined_call_operand.hbm [shape: bf16[128,128], index: 6, kind: input, shape index: {}]
  %s7 = inlined_call_operand.vmem [shape: f32[1,128], index: 7, kind: input, shape index: {}]
  %s8 = inlined_call_operand.hbm [shape: f32[8,128], index: 8, kind: output, shape index: {}]
  %s9 = sld [smem:[#allocation0]]
  $region62: #{tpu_custom_call.1} parent=0
    _
  %s11 = ssub.s32 1, %s9
  %s12 = scalar_select 0, %s11, %s9
  $region1: #{tpu_custom_call.1} parent=0
    #allocation2 [shape = 'u8[16384]{0}', space=vmem, size = 0x4000, scoped, tag = 'input window, operand 0, single buffered']
    #allocation3 [shape = 's32[1]{0}', space=sflag, size = 0x4, scoped, tag = 'scoped memory for tpu_custom_call.1']
    #allocation4 [shape = 's32[1]{0}', space=sflag, size = 0x4, scoped, tag = 'scoped memory for tpu_custom_call.1']
    #allocation5 [shape = 'u8[262144]{0}', space=vmem, size = 0x40000, scoped, tag = 'input window, operand 1, single buffered']
    #allocation6 [shape = 's32[1]{0}', space=sflag, size = 0x4, scoped, tag = 'scoped memory for tpu_custom_call.1']
    #allocation7 [shape = 'u8[32768]{0}', space=vmem, size = 0x8000, scoped, tag = 'input window, operand 3, single buffered']
    #allocation8 [shape = 'u8[32768]{0}', space=vmem, size = 0x8000, scoped, tag = 'input window, operand 4, single buffered']
    #allocation9 [shape = 's32[1]{0}', space=sflag, size = 0x4, scoped, tag = 'scoped memory for tpu_custom_call.1']
    #allocation10 [shape = 'u8[32768]{0}', space=vmem, size = 0x8000, scoped, tag = 'input window, operand 6, single buffered']
    #allocation11 [shape = 'u8[4096]{0}', space=vmem, size = 0x1000, scoped, tag = 'output window, operand 0, single buffered']
    %13 = vsyncpa [#allocation3], 0
    %14 = vsyncpa [#allocation6], 0
    %15 = vsyncpa [#allocation9], 0
    %16 = vsyncpa [#allocation4], 0
    // Predicated region
    $region2: #{tpu_custom_call.1} parent=1 // pred_check
      _
    $region3: #{tpu_custom_call.1} parent=1 // pred_check_branch
      %18 = sbr.rel (0) target = $region5
    $region4: #{tpu_custom_call.1} parent=1 // pred_region
      %20 = vsyncadd [#allocation3], 0
      %s22 = sshll.u32 %s0, 4
      %s23 = int_to_ptr.hbm [resolvable:$true] %s22
      %s24 = sshll.u32 [#allocation2], 4
      %s25 = int_to_ptr.vmem [resolvable:$true] %s24
      %27 = dma.hbm_to_vmem [thread:$0]  %s23, 512, %s25, [#allocation3]
    $region5: #{tpu_custom_call.1} parent=1 // pred_fallthru
      _
    // Predicated region
    $region6: #{tpu_custom_call.1} parent=1 // pred_check
      _
    $region7: #{tpu_custom_call.1} parent=1 // pred_check_branch
      %29 = sbr.rel (0) target = $region9
    $region8: #{tpu_custom_call.1} parent=1 // pred_region
      %31 = vsyncadd [#allocation6], 0
      %s32 = sshll.u32 %s1, 4
      %s33 = int_to_ptr.hbm [resolvable:$true] %s32
      %s34 = sshll.u32 [#allocation5], 4
      %s35 = int_to_ptr.vmem [resolvable:$true] %s34
      %40 = dma.hbm_to_vmem [thread:$0]  %s33, 8192, %s35, [#allocation6], 64, 64, 4
    $region9: #{tpu_custom_call.1} parent=1 // pred_fallthru
      _
    // Predicated region
    $region10: #{tpu_custom_call.1} parent=1 // pred_check
      _
    $region11: #{tpu_custom_call.1} parent=1 // pred_check_branch
      %42 = sbr.rel (0) target = $region13
    $region12: #{tpu_custom_call.1} parent=1 // pred_region
      _
    $region13: #{tpu_custom_call.1} parent=1 // pred_fallthru
      _
    // Predicated region
    $region14: #{tpu_custom_call.1} parent=1 // pred_check
      _
    $region15: #{tpu_custom_call.1} parent=1 // pred_check_branch
      %44 = sbr.rel (0) target = $region17
    $region16: #{tpu_custom_call.1} parent=1 // pred_region
      %46 = vsyncadd [#allocation6], 0
      %s47 = sshll.u32 %s3, 4
      %s48 = int_to_ptr.hbm [resolvable:$true] %s47
      %s49 = sshll.u32 [#allocation7], 4
      %s50 = int_to_ptr.vmem [resolvable:$true] %s49
      %55 = dma.hbm_to_vmem [thread:$0]  %s48, 1024, %s50, [#allocation6], 64, 64, 4
    $region17: #{tpu_custom_call.1} parent=1 // pred_fallthru
      _
    // Predicated region
    $region18: #{tpu_custom_call.1} parent=1 // pred_check
      _
    $region19: #{tpu_custom_call.1} parent=1 // pred_check_branch
      %57 = sbr.rel (0) target = $region21
    $region20: #{tpu_custom_call.1} parent=1 // pred_region
      %59 = vsyncadd [#allocation9], 0
      %s60 = sshll.u32 %s4, 4
      %s61 = int_to_ptr.hbm [resolvable:$true] %s60
      %s62 = sshll.u32 [#allocation8], 4
      %s63 = int_to_ptr.vmem [resolvable:$true] %s62
      %68 = dma.hbm_to_vmem [thread:$0]  %s61, 1024, %s63, [#allocation9], 64, 64, 4
    $region21: #{tpu_custom_call.1} parent=1 // pred_fallthru
      _
    // Predicated region
    $region22: #{tpu_custom_call.1} parent=1 // pred_check
      _
    $region23: #{tpu_custom_call.1} parent=1 // pred_check_branch
      %70 = sbr.rel (0) target = $region25
    $region24: #{tpu_custom_call.1} parent=1 // pred_region
      _
    $region25: #{tpu_custom_call.1} parent=1 // pred_fallthru
      _
    // Predicated region
    $region26: #{tpu_custom_call.1} parent=1 // pred_check
      _
    $region27: #{tpu_custom_call.1} parent=1 // pred_check_branch
      %72 = sbr.rel (0) target = $region29
    $region28: #{tpu_custom_call.1} parent=1 // pred_region
      %74 = vsyncadd [#allocation9], 0
      %s75 = sshll.u32 %s6, 4
      %s76 = int_to_ptr.hbm [resolvable:$true] %s75
      %s77 = sshll.u32 [#allocation10], 4
      %s78 = int_to_ptr.vmem [resolvable:$true] %s77
      %83 = dma.hbm_to_vmem [thread:$0]  %s76, 1024, %s78, [#allocation9], 64, 64, 4
    $region29: #{tpu_custom_call.1} parent=1 // pred_fallthru
      _
    // Predicated region
    $region30: #{tpu_custom_call.1} parent=1 // pred_check
      _
    $region31: #{tpu_custom_call.1} parent=1 // pred_check_branch
      %85 = sbr.rel (0) target = $region33
    $region32: #{tpu_custom_call.1} parent=1 // pred_region
      _
    $region33: #{tpu_custom_call.1} parent=1 // pred_fallthru
      _
    // Predicated region
    $region34: #{tpu_custom_call.1} parent=1 // pred_check
      _
    $region35: #{tpu_custom_call.1} parent=1 // pred_check_branch
      %87 = sbr.rel (0) target = $region37
    $region36: #{tpu_custom_call.1} parent=1 // pred_region
      %89 = dma.done [#allocation3], 512
    $region37: #{tpu_custom_call.1} parent=1 // pred_fallthru
      _
    // Predicated region
    $region38: #{tpu_custom_call.1} parent=1 // pred_check
      _
    $region39: #{tpu_custom_call.1} parent=1 // pred_check_branch
      %91 = sbr.rel (0) target = $region41
    $region40: #{tpu_custom_call.1} parent=1 // pred_region
      %93 = dma.done [#allocation6], 8192
    $region41: #{tpu_custom_call.1} parent=1 // pred_fallthru
      _
    // Predicated region
    $region42: #{tpu_custom_call.1} parent=1 // pred_check
      _
    $region43: #{tpu_custom_call.1} parent=1 // pred_check_branch
      %95 = sbr.rel (0) target = $region45
    $region44: #{tpu_custom_call.1} parent=1 // pred_region
      %97 = dma.done [#allocation6], 1024
    $region45: #{tpu_custom_call.1} parent=1 // pred_fallthru
      _
    // Predicated region
    $region46: #{tpu_custom_call.1} parent=1 // pred_check
      _
    $region47: #{tpu_custom_call.1} parent=1 // pred_check_branch
      %99 = sbr.rel (0) target = $region49
    $region48: #{tpu_custom_call.1} parent=1 // pred_region
      %101 = dma.done [#allocation9], 1024
    $region49: #{tpu_custom_call.1} parent=1 // pred_fallthru
      _
    // Predicated region
    $region50: #{tpu_custom_call.1} parent=1 // pred_check
      _
    $region51: #{tpu_custom_call.1} parent=1 // pred_check_branch
      %103 = sbr.rel (0) target = $region53
    $region52: #{tpu_custom_call.1} parent=1 // pred_region
      %105 = dma.done [#allocation9], 1024
    $region53: #{tpu_custom_call.1} parent=1 // pred_fallthru
      _
    %v107 = vld [vmem:[#allocation2] sm:$0xff]
    %v108 = vld [vmem:[#allocation2 + $0x8] sm:$0xff]
    %v109 = vld [vmem:[#allocation2 + $0x10] sm:$0xff]
    %v110 = vld [vmem:[#allocation2 + $0x18] sm:$0xff]
    %v111 = vld [vmem:[#allocation5] sm:$0xf]
    %v112 = vld [vmem:[#allocation5 + $0x4] sm:$0xf]
    %v113 = vld [vmem:[#allocation5 + $0x8] sm:$0xf]
    %v114 = vld [vmem:[#allocation5 + $0xc] sm:$0xf]
    %v115 = vld [vmem:[#allocation5 + $0x10] sm:$0xf]
    %v116 = vld [vmem:[#allocation5 + $0x14] sm:$0xf]
    %v117 = vld [vmem:[#allocation5 + $0x18] sm:$0xf]
    %v118 = vld [vmem:[#allocation5 + $0x1c] sm:$0xf]
    %v119 = vld [vmem:[#allocation5 + $0x20] sm:$0xf]
    %v120 = vld [vmem:[#allocation5 + $0x24] sm:$0xf]
    %v121 = vld [vmem:[#allocation5 + $0x28] sm:$0xf]
    %v122 = vld [vmem:[#allocation5 + $0x2c] sm:$0xf]
    %v123 = vld [vmem:[#allocation5 + $0x30] sm:$0xf]
    %v124 = vld [vmem:[#allocation5 + $0x34] sm:$0xf]
    %v125 = vld [vmem:[#allocation5 + $0x38] sm:$0xf]
    %v126 = vld [vmem:[#allocation5 + $0x3c] sm:$0xf]
    %v127 = vld [vmem:[#allocation5 + $0x40] sm:$0xf]
    %v128 = vld [vmem:[#allocation5 + $0x44] sm:$0xf]
    %v129 = vld [vmem:[#allocation5 + $0x48] sm:$0xf]
    %v130 = vld [vmem:[#allocation5 + $0x4c] sm:$0xf]
    %v131 = vld [vmem:[#allocation5 + $0x50] sm:$0xf]
    %v132 = vld [vmem:[#allocation5 + $0x54] sm:$0xf]
    %v133 = vld [vmem:[#allocation5 + $0x58] sm:$0xf]
    %v134 = vld [vmem:[#allocation5 + $0x5c] sm:$0xf]
    %v135 = vld [vmem:[#allocation5 + $0x60] sm:$0xf]
    %v136 = vld [vmem:[#allocation5 + $0x64] sm:$0xf]
    %v137 = vld [vmem:[#allocation5 + $0x68] sm:$0xf]
    %v138 = vld [vmem:[#allocation5 + $0x6c] sm:$0xf]
    %v139 = vld [vmem:[#allocation5 + $0x70] sm:$0xf]
    %v140 = vld [vmem:[#allocation5 + $0x74] sm:$0xf]
    %v141 = vld [vmem:[#allocation5 + $0x78] sm:$0xf]
    %v142 = vld [vmem:[#allocation5 + $0x7c] sm:$0xf]
    %v143 = vld [vmem:[#allocation5 + $0x80] sm:$0xf]
    %v144 = vld [vmem:[#allocation5 + $0x84] sm:$0xf]
    %v145 = vld [vmem:[#allocation5 + $0x88] sm:$0xf]
    %v146 = vld [vmem:[#allocation5 + $0x8c] sm:$0xf]
    %v147 = vld [vmem:[#allocation5 + $0x90] sm:$0xf]
    %v148 = vld [vmem:[#allocation5 + $0x94] sm:$0xf]
    %v149 = vld [vmem:[#allocation5 + $0x98] sm:$0xf]
    %v150 = vld [vmem:[#allocation5 + $0x9c] sm:$0xf]
    %v151 = vld [vmem:[#allocation5 + $0xa0] sm:$0xf]
    %v152 = vld [vmem:[#allocation5 + $0xa4] sm:$0xf]
    %v153 = vld [vmem:[#allocation5 + $0xa8] sm:$0xf]
    %v154 = vld [vmem:[#allocation5 + $0xac] sm:$0xf]
    %v155 = vld [vmem:[#allocation5 + $0xb0] sm:$0xf]
    %v156 = vld [vmem:[#allocation5 + $0xb4] sm:$0xf]
    %v157 = vld [vmem:[#allocation5 + $0xb8] sm:$0xf]
    %v158 = vld [vmem:[#allocation5 + $0xbc] sm:$0xf]
    %v159 = vld [vmem:[#allocation5 + $0xc0] sm:$0xf]
    %v160 = vld [vmem:[#allocation5 + $0xc4] sm:$0xf]
    %v161 = vld [vmem:[#allocation5 + $0xc8] sm:$0xf]
    %v162 = vld [vmem:[#allocation5 + $0xcc] sm:$0xf]
    %v163 = vld [vmem:[#allocation5 + $0xd0] sm:$0xf]
    %v164 = vld [vmem:[#allocation5 + $0xd4] sm:$0xf]
    %v165 = vld [vmem:[#allocation5 + $0xd8] sm:$0xf]
    %v166 = vld [vmem:[#allocation5 + $0xdc] sm:$0xf]
    %v167 = vld [vmem:[#allocation5 + $0xe0] sm:$0xf]
    %v168 = vld [vmem:[#allocation5 + $0xe4] sm:$0xf]
    %v169 = vld [vmem:[#allocation5 + $0xe8] sm:$0xf]
    %v170 = vld [vmem:[#allocation5 + $0xec] sm:$0xf]
    %v171 = vld [vmem:[#allocation5 + $0xf0] sm:$0xf]
    %v172 = vld [vmem:[#allocation5 + $0xf4] sm:$0xf]
    %v173 = vld [vmem:[#allocation5 + $0xf8] sm:$0xf]
    %v174 = vld [vmem:[#allocation5 + $0xfc] sm:$0xf]
    %v175 = vld [vmem:[#allocation5 + $0x100] sm:$0xf]
    %v176 = vld [vmem:[#allocation5 + $0x104] sm:$0xf]
    %v177 = vld [vmem:[#allocation5 + $0x108] sm:$0xf]
    %v178 = vld [vmem:[#allocation5 + $0x10c] sm:$0xf]
    %v179 = vld [vmem:[#allocation5 + $0x110] sm:$0xf]
    %v180 = vld [vmem:[#allocation5 + $0x114] sm:$0xf]
    %v181 = vld [vmem:[#allocation5 + $0x118] sm:$0xf]
    %v182 = vld [vmem:[#allocation5 + $0x11c] sm:$0xf]
    %v183 = vld [vmem:[#allocation5 + $0x120] sm:$0xf]
    %v184 = vld [vmem:[#allocation5 + $0x124] sm:$0xf]
    %v185 = vld [vmem:[#allocation5 + $0x128] sm:$0xf]
    %v186 = vld [vmem:[#allocation5 + $0x12c] sm:$0xf]
    %v187 = vld [vmem:[#allocation5 + $0x130] sm:$0xf]
    %v188 = vld [vmem:[#allocation5 + $0x134] sm:$0xf]
    %v189 = vld [vmem:[#allocation5 + $0x138] sm:$0xf]
    %v190 = vld [vmem:[#allocation5 + $0x13c] sm:$0xf]
    %v191 = vld [vmem:[#allocation5 + $0x140] sm:$0xf]
    %v192 = vld [vmem:[#allocation5 + $0x144] sm:$0xf]
    %v193 = vld [vmem:[#allocation5 + $0x148] sm:$0xf]
    %v194 = vld [vmem:[#allocation5 + $0x14c] sm:$0xf]
    %v195 = vld [vmem:[#allocation5 + $0x150] sm:$0xf]
    %v196 = vld [vmem:[#allocation5 + $0x154] sm:$0xf]
    %v197 = vld [vmem:[#allocation5 + $0x158] sm:$0xf]
    %v198 = vld [vmem:[#allocation5 + $0x15c] sm:$0xf]
    %v199 = vld [vmem:[#allocation5 + $0x160] sm:$0xf]
    %v200 = vld [vmem:[#allocation5 + $0x164] sm:$0xf]
    %v201 = vld [vmem:[#allocation5 + $0x168] sm:$0xf]
    %v202 = vld [vmem:[#allocation5 + $0x16c] sm:$0xf]
    %v203 = vld [vmem:[#allocation5 + $0x170] sm:$0xf]
    %v204 = vld [vmem:[#allocation5 + $0x174] sm:$0xf]
    %v205 = vld [vmem:[#allocation5 + $0x178] sm:$0xf]
    %v206 = vld [vmem:[#allocation5 + $0x17c] sm:$0xf]
    %v207 = vld [vmem:[#allocation5 + $0x180] sm:$0xf]
    %v208 = vld [vmem:[#allocation5 + $0x184] sm:$0xf]
    %v209 = vld [vmem:[#allocation5 + $0x188] sm:$0xf]
    %v210 = vld [vmem:[#allocation5 + $0x18c] sm:$0xf]
    %v211 = vld [vmem:[#allocation5 + $0x190] sm:$0xf]
    %v212 = vld [vmem:[#allocation5 + $0x194] sm:$0xf]
    %v213 = vld [vmem:[#allocation5 + $0x198] sm:$0xf]
    %v214 = vld [vmem:[#allocation5 + $0x19c] sm:$0xf]
    %v215 = vld [vmem:[#allocation5 + $0x1a0] sm:$0xf]
    %v216 = vld [vmem:[#allocation5 + $0x1a4] sm:$0xf]
    %v217 = vld [vmem:[#allocation5 + $0x1a8] sm:$0xf]
    %v218 = vld [vmem:[#allocation5 + $0x1ac] sm:$0xf]
    %v219 = vld [vmem:[#allocation5 + $0x1b0] sm:$0xf]
    %v220 = vld [vmem:[#allocation5 + $0x1b4] sm:$0xf]
    %v221 = vld [vmem:[#allocation5 + $0x1b8] sm:$0xf]
    %v222 = vld [vmem:[#allocation5 + $0x1bc] sm:$0xf]
    %v223 = vld [vmem:[#allocation5 + $0x1c0] sm:$0xf]
    %v224 = vld [vmem:[#allocation5 + $0x1c4] sm:$0xf]
    %v225 = vld [vmem:[#allocation5 + $0x1c8] sm:$0xf]
    %v226 = vld [vmem:[#allocation5 + $0x1cc] sm:$0xf]
    %v227 = vld [vmem:[#allocation5 + $0x1d0] sm:$0xf]
    %v228 = vld [vmem:[#allocation5 + $0x1d4] sm:$0xf]
    %v229 = vld [vmem:[#allocation5 + $0x1d8] sm:$0xf]
    %v230 = vld [vmem:[#allocation5 + $0x1dc] sm:$0xf]
    %v231 = vld [vmem:[#allocation5 + $0x1e0] sm:$0xf]
    %v232 = vld [vmem:[#allocation5 + $0x1e4] sm:$0xf]
    %v233 = vld [vmem:[#allocation5 + $0x1e8] sm:$0xf]
    %v234 = vld [vmem:[#allocation5 + $0x1ec] sm:$0xf]
    %v235 = vld [vmem:[#allocation5 + $0x1f0] sm:$0xf]
    %v236 = vld [vmem:[#allocation5 + $0x1f4] sm:$0xf]
    %v237 = vld [vmem:[#allocation5 + $0x1f8] sm:$0xf]
    %v238 = vld [vmem:[#allocation5 + $0x1fc] sm:$0xf]
    %v239 = vld [vmem:[%s2] sm:$0x1]
    %v241 = vperm.slane %v239, 0
    %v247 = vunpack.c.l.b16 %v107
    %v248 = vunpack.c.h.b16 %v107
    %v249 = vunpack.c.l.b16 %v108
    %v250 = vunpack.c.h.b16 %v108
    %v251 = vunpack.c.l.b16 %v109
    %v252 = vunpack.c.h.b16 %v109
    %v253 = vunpack.c.l.b16 %v110
    %v254 = vunpack.c.h.b16 %v110
    %v255 = vpack.c.b16 %v247, %v247
    %v256 = vpack.c.b16 %v248, %v248
    %v257 = vpack.c.b16 %v249, %v249
    %v258 = vpack.c.b16 %v250, %v250
    %v259 = vpack.c.b16 %v251, %v251
    %v260 = vpack.c.b16 %v252, %v252
    %v261 = vpack.c.b16 %v253, %v253
    %v262 = vpack.c.b16 %v254, %v254
    %v399 = vunpack.c.l.b16 %v111
    %v400 = vunpack.c.l.b16 %v112
    %v401 = vunpack.c.l.b16 %v113
    %v402 = vunpack.c.l.b16 %v114
    %v403 = vunpack.c.l.b16 %v115
    %v404 = vunpack.c.l.b16 %v116
    %v405 = vunpack.c.l.b16 %v117
    %v406 = vunpack.c.l.b16 %v118
    %v407 = vunpack.c.l.b16 %v119
    %v408 = vunpack.c.l.b16 %v120
    %v409 = vunpack.c.l.b16 %v121
    %v410 = vunpack.c.l.b16 %v122
    %v411 = vunpack.c.l.b16 %v123
    %v412 = vunpack.c.l.b16 %v124
    %v413 = vunpack.c.l.b16 %v125
    %v414 = vunpack.c.l.b16 %v126
    %v415 = vunpack.c.l.b16 %v127
    %v416 = vunpack.c.l.b16 %v128
    %v417 = vunpack.c.l.b16 %v129
    %v418 = vunpack.c.l.b16 %v130
    %v419 = vunpack.c.l.b16 %v131
    %v420 = vunpack.c.l.b16 %v132
    %v421 = vunpack.c.l.b16 %v133
    %v422 = vunpack.c.l.b16 %v134
    %v423 = vunpack.c.l.b16 %v135
    %v424 = vunpack.c.l.b16 %v136
    %v425 = vunpack.c.l.b16 %v137
    %v426 = vunpack.c.l.b16 %v138
    %v427 = vunpack.c.l.b16 %v139
    %v428 = vunpack.c.l.b16 %v140
    %v429 = vunpack.c.l.b16 %v141
    %v430 = vunpack.c.l.b16 %v142
    %v431 = vunpack.c.l.b16 %v143
    %v432 = vunpack.c.l.b16 %v144
    %v433 = vunpack.c.l.b16 %v145
    %v434 = vunpack.c.l.b16 %v146
    %v435 = vunpack.c.l.b16 %v147
    %v436 = vunpack.c.l.b16 %v148
    %v437 = vunpack.c.l.b16 %v149
    %v438 = vunpack.c.l.b16 %v150
    %v439 = vunpack.c.l.b16 %v151
    %v440 = vunpack.c.l.b16 %v152
    %v441 = vunpack.c.l.b16 %v153
    %v442 = vunpack.c.l.b16 %v154
    %v443 = vunpack.c.l.b16 %v155
    %v444 = vunpack.c.l.b16 %v156
    %v445 = vunpack.c.l.b16 %v157
    %v446 = vunpack.c.l.b16 %v158
    %v447 = vunpack.c.l.b16 %v159
    %v448 = vunpack.c.l.b16 %v160
    %v449 = vunpack.c.l.b16 %v161
    %v450 = vunpack.c.l.b16 %v162
    %v451 = vunpack.c.l.b16 %v163
    %v452 = vunpack.c.l.b16 %v164
    %v453 = vunpack.c.l.b16 %v165
    %v454 = vunpack.c.l.b16 %v166
    %v455 = vunpack.c.l.b16 %v167
    %v456 = vunpack.c.l.b16 %v168
    %v457 = vunpack.c.l.b16 %v169
    %v458 = vunpack.c.l.b16 %v170
    %v459 = vunpack.c.l.b16 %v171
    %v460 = vunpack.c.l.b16 %v172
    %v461 = vunpack.c.l.b16 %v173
    %v462 = vunpack.c.l.b16 %v174
    %v463 = vunpack.c.l.b16 %v175
    %v464 = vunpack.c.l.b16 %v176
    %v465 = vunpack.c.l.b16 %v177
    %v466 = vunpack.c.l.b16 %v178
    %v467 = vunpack.c.l.b16 %v179
    %v468 = vunpack.c.l.b16 %v180
    %v469 = vunpack.c.l.b16 %v181
    %v470 = vunpack.c.l.b16 %v182
    %v471 = vunpack.c.l.b16 %v183
    %v472 = vunpack.c.l.b16 %v184
    %v473 = vunpack.c.l.b16 %v185
    %v474 = vunpack.c.l.b16 %v186
    %v475 = vunpack.c.l.b16 %v187
    %v476 = vunpack.c.l.b16 %v188
    %v477 = vunpack.c.l.b16 %v189
    %v478 = vunpack.c.l.b16 %v190
    %v479 = vunpack.c.l.b16 %v191
    %v480 = vunpack.c.l.b16 %v192
    %v481 = vunpack.c.l.b16 %v193
    %v482 = vunpack.c.l.b16 %v194
    %v483 = vunpack.c.l.b16 %v195
    %v484 = vunpack.c.l.b16 %v196
    %v485 = vunpack.c.l.b16 %v197
    %v486 = vunpack.c.l.b16 %v198
    %v487 = vunpack.c.l.b16 %v199
    %v488 = vunpack.c.l.b16 %v200
    %v489 = vunpack.c.l.b16 %v201
    %v490 = vunpack.c.l.b16 %v202
    %v491 = vunpack.c.l.b16 %v203
    %v492 = vunpack.c.l.b16 %v204
    %v493 = vunpack.c.l.b16 %v205
    %v494 = vunpack.c.l.b16 %v206
    %v495 = vunpack.c.l.b16 %v207
    %v496 = vunpack.c.l.b16 %v208
    %v497 = vunpack.c.l.b16 %v209
    %v498 = vunpack.c.l.b16 %v210
    %v499 = vunpack.c.l.b16 %v211
    %v500 = vunpack.c.l.b16 %v212
    %v501 = vunpack.c.l.b16 %v213
    %v502 = vunpack.c.l.b16 %v214
    %v503 = vunpack.c.l.b16 %v215
    %v504 = vunpack.c.l.b16 %v216
    %v505 = vunpack.c.l.b16 %v217
    %v506 = vunpack.c.l.b16 %v218
    %v507 = vunpack.c.l.b16 %v219
    %v508 = vunpack.c.l.b16 %v220
    %v509 = vunpack.c.l.b16 %v221
    %v510 = vunpack.c.l.b16 %v222
    %v511 = vunpack.c.l.b16 %v223
    %v512 = vunpack.c.l.b16 %v224
    %v513 = vunpack.c.l.b16 %v225
    %v514 = vunpack.c.l.b16 %v226
    %v515 = vunpack.c.l.b16 %v227
    %v516 = vunpack.c.l.b16 %v228
    %v517 = vunpack.c.l.b16 %v229
    %v518 = vunpack.c.l.b16 %v230
    %v519 = vunpack.c.l.b16 %v231
    %v520 = vunpack.c.l.b16 %v232
    %v521 = vunpack.c.l.b16 %v233
    %v522 = vunpack.c.l.b16 %v234
    %v523 = vunpack.c.l.b16 %v235
    %v524 = vunpack.c.l.b16 %v236
    %v525 = vunpack.c.l.b16 %v237
    %v526 = vunpack.c.l.b16 %v238
    %v527 = vpack.c.b16 %v400, %v399
    %v528 = vpack.c.b16 %v402, %v401
    %v529 = vpack.c.b16 %v404, %v403
    %v530 = vpack.c.b16 %v406, %v405
    %v531 = vpack.c.b16 %v408, %v407
    %v532 = vpack.c.b16 %v410, %v409
    %v533 = vpack.c.b16 %v412, %v411
    %v534 = vpack.c.b16 %v414, %v413
    %v535 = vpack.c.b16 %v416, %v415
    %v536 = vpack.c.b16 %v418, %v417
    %v537 = vpack.c.b16 %v420, %v419
    %v538 = vpack.c.b16 %v422, %v421
    %v539 = vpack.c.b16 %v424, %v423
    %v540 = vpack.c.b16 %v426, %v425
    %v541 = vpack.c.b16 %v428, %v427
    %v542 = vpack.c.b16 %v430, %v429
    %v543 = vpack.c.b16 %v432, %v431
    %v544 = vpack.c.b16 %v434, %v433
    %v545 = vpack.c.b16 %v436, %v435
    %v546 = vpack.c.b16 %v438, %v437
    %v547 = vpack.c.b16 %v440, %v439
    %v548 = vpack.c.b16 %v442, %v441
    %v549 = vpack.c.b16 %v444, %v443
    %v550 = vpack.c.b16 %v446, %v445
    %v551 = vpack.c.b16 %v448, %v447
    %v552 = vpack.c.b16 %v450, %v449
    %v553 = vpack.c.b16 %v452, %v451
    %v554 = vpack.c.b16 %v454, %v453
    %v555 = vpack.c.b16 %v456, %v455
    %v556 = vpack.c.b16 %v458, %v457
    %v557 = vpack.c.b16 %v460, %v459
    %v558 = vpack.c.b16 %v462, %v461
    %v559 = vpack.c.b16 %v464, %v463
    %v560 = vpack.c.b16 %v466, %v465
    %v561 = vpack.c.b16 %v468, %v467
    %v562 = vpack.c.b16 %v470, %v469
    %v563 = vpack.c.b16 %v472, %v471
    %v564 = vpack.c.b16 %v474, %v473
    %v565 = vpack.c.b16 %v476, %v475
    %v566 = vpack.c.b16 %v478, %v477
    %v567 = vpack.c.b16 %v480, %v479
    %v568 = vpack.c.b16 %v482, %v481
    %v569 = vpack.c.b16 %v484, %v483
    %v570 = vpack.c.b16 %v486, %v485
    %v571 = vpack.c.b16 %v488, %v487
    %v572 = vpack.c.b16 %v490, %v489
    %v573 = vpack.c.b16 %v492, %v491
    %v574 = vpack.c.b16 %v494, %v493
    %v575 = vpack.c.b16 %v496, %v495
    %v576 = vpack.c.b16 %v498, %v497
    %v577 = vpack.c.b16 %v500, %v499
    %v578 = vpack.c.b16 %v502, %v501
    %v579 = vpack.c.b16 %v504, %v503
    %v580 = vpack.c.b16 %v506, %v505
    %v581 = vpack.c.b16 %v508, %v507
    %v582 = vpack.c.b16 %v510, %v509
    %v583 = vpack.c.b16 %v512, %v511
    %v584 = vpack.c.b16 %v514, %v513
    %v585 = vpack.c.b16 %v516, %v515
    %v586 = vpack.c.b16 %v518, %v517
    %v587 = vpack.c.b16 %v520, %v519
    %v588 = vpack.c.b16 %v522, %v521
    %v589 = vpack.c.b16 %v524, %v523
    %v590 = vpack.c.b16 %v526, %v525
    %655 = vmatpush.bf16.msra.mxu0 %v534
    %656 = vmatpush.bf16.msra.mxu0 %v533
    %657 = vmatpush.bf16.msra.mxu0 %v532
    %658 = vmatpush.bf16.msra.mxu0 %v531
    %659 = vmatpush.bf16.msra.mxu0 %v530
    %660 = vmatpush.bf16.msra.mxu0 %v529
    %661 = vmatpush.bf16.msra.mxu0 %v528
    %662 = vmatpush.bf16.msra.mxu0 %v527
    %663 = vmatmul.bf16.gmra.mxu0 %v255
    %v664 = vpop.f32.mrf.mxu0
    %v665 = vadd.f32 %v241, %v664
    %v666 = vpop.f32.mrf.mxu0
    %667 = vdwg.mxu0
    %668 = vmatpush.bf16.msra.mxu0 %v542
    %669 = vmatpush.bf16.msra.mxu0 %v541
    %670 = vmatpush.bf16.msra.mxu0 %v540
    %671 = vmatpush.bf16.msra.mxu0 %v539
    %672 = vmatpush.bf16.msra.mxu0 %v538
    %673 = vmatpush.bf16.msra.mxu0 %v537
    %674 = vmatpush.bf16.msra.mxu0 %v536
    %675 = vmatpush.bf16.msra.mxu0 %v535
    %676 = vmatmul.bf16.gmra.mxu0 %v256
    %v677 = vpop.f32.mrf.mxu0
    %v678 = vadd.f32 %v665, %v677
    %v679 = vpop.f32.mrf.mxu0
    %680 = vdwg.mxu0
    %681 = vmatpush.bf16.msra.mxu0 %v550
    %682 = vmatpush.bf16.msra.mxu0 %v549
    %683 = vmatpush.bf16.msra.mxu0 %v548
    %684 = vmatpush.bf16.msra.mxu0 %v547
    %685 = vmatpush.bf16.msra.mxu0 %v546
    %686 = vmatpush.bf16.msra.mxu0 %v545
    %687 = vmatpush.bf16.msra.mxu0 %v544
    %688 = vmatpush.bf16.msra.mxu0 %v543
    %689 = vmatmul.bf16.gmra.mxu0 %v257
    %v690 = vpop.f32.mrf.mxu0
    %v691 = vadd.f32 %v678, %v690
    %v692 = vpop.f32.mrf.mxu0
    %693 = vdwg.mxu0
    %694 = vmatpush.bf16.msra.mxu0 %v558
    %695 = vmatpush.bf16.msra.mxu0 %v557
    %696 = vmatpush.bf16.msra.mxu0 %v556
    %697 = vmatpush.bf16.msra.mxu0 %v555
    %698 = vmatpush.bf16.msra.mxu0 %v554
    %699 = vmatpush.bf16.msra.mxu0 %v553
    %700 = vmatpush.bf16.msra.mxu0 %v552
    %701 = vmatpush.bf16.msra.mxu0 %v551
    %702 = vmatmul.bf16.gmra.mxu0 %v258
    %v703 = vpop.f32.mrf.mxu0
    %v704 = vadd.f32 %v691, %v703
    %v705 = vpop.f32.mrf.mxu0
    %706 = vdwg.mxu0
    %707 = vmatpush.bf16.msra.mxu0 %v566
    %708 = vmatpush.bf16.msra.mxu0 %v565
    %709 = vmatpush.bf16.msra.mxu0 %v564
    %710 = vmatpush.bf16.msra.mxu0 %v563
    %711 = vmatpush.bf16.msra.mxu0 %v562
    %712 = vmatpush.bf16.msra.mxu0 %v561
    %713 = vmatpush.bf16.msra.mxu0 %v560
    %714 = vmatpush.bf16.msra.mxu0 %v559
    %715 = vmatmul.bf16.gmra.mxu0 %v259
    %v716 = vpop.f32.mrf.mxu0
    %v717 = vadd.f32 %v704, %v716
    %v718 = vpop.f32.mrf.mxu0
    %719 = vdwg.mxu0
    %720 = vmatpush.bf16.msra.mxu0 %v574
    %721 = vmatpush.bf16.msra.mxu0 %v573
    %722 = vmatpush.bf16.msra.mxu0 %v572
    %723 = vmatpush.bf16.msra.mxu0 %v571
    %724 = vmatpush.bf16.msra.mxu0 %v570
    %725 = vmatpush.bf16.msra.mxu0 %v569
    %726 = vmatpush.bf16.msra.mxu0 %v568
    %727 = vmatpush.bf16.msra.mxu0 %v567
    %728 = vmatmul.bf16.gmra.mxu0 %v260
    %v729 = vpop.f32.mrf.mxu0
    %v730 = vadd.f32 %v717, %v729
    %v731 = vpop.f32.mrf.mxu0
    %732 = vdwg.mxu0
    %733 = vmatpush.bf16.msra.mxu0 %v582
    %734 = vmatpush.bf16.msra.mxu0 %v581
    %735 = vmatpush.bf16.msra.mxu0 %v580
    %736 = vmatpush.bf16.msra.mxu0 %v579
    %737 = vmatpush.bf16.msra.mxu0 %v578
    %738 = vmatpush.bf16.msra.mxu0 %v577
    %739 = vmatpush.bf16.msra.mxu0 %v576
    %740 = vmatpush.bf16.msra.mxu0 %v575
    %741 = vmatmul.bf16.gmra.mxu0 %v261
    %v742 = vpop.f32.mrf.mxu0
    %v743 = vadd.f32 %v730, %v742
    %v744 = vpop.f32.mrf.mxu0
    %745 = vdwg.mxu0
    %746 = vmatpush.bf16.msra.mxu0 %v590
    %747 = vmatpush.bf16.msra.mxu0 %v589
    %748 = vmatpush.bf16.msra.mxu0 %v588
    %749 = vmatpush.bf16.msra.mxu0 %v587
    %750 = vmatpush.bf16.msra.mxu0 %v586
    %751 = vmatpush.bf16.msra.mxu0 %v585
    %752 = vmatpush.bf16.msra.mxu0 %v584
    %753 = vmatpush.bf16.msra.mxu0 %v583
    %754 = vmatmul.bf16.gmra.mxu0 %v262
    %v755 = vpop.f32.mrf.mxu0
    %v756 = vadd.f32 %v743, %v755
    %v757 = vpop.f32.mrf.mxu0
    %758 = vdwg.mxu0
    %v759 = vld [vmem:[#allocation7] sm:$0xf]
    %v760 = vld [vmem:[#allocation7 + $0x4] sm:$0xf]
    %v761 = vld [vmem:[#allocation7 + $0x8] sm:$0xf]
    %v762 = vld [vmem:[#allocation7 + $0xc] sm:$0xf]
    %v763 = vld [vmem:[#allocation7 + $0x10] sm:$0xf]
    %v764 = vld [vmem:[#allocation7 + $0x14] sm:$0xf]
    %v765 = vld [vmem:[#allocation7 + $0x18] sm:$0xf]
    %v766 = vld [vmem:[#allocation7 + $0x1c] sm:$0xf]
    %v767 = vld [vmem:[#allocation7 + $0x20] sm:$0xf]
    %v768 = vld [vmem:[#allocation7 + $0x24] sm:$0xf]
    %v769 = vld [vmem:[#allocation7 + $0x28] sm:$0xf]
    %v770 = vld [vmem:[#allocation7 + $0x2c] sm:$0xf]
    %v771 = vld [vmem:[#allocation7 + $0x30] sm:$0xf]
    %v772 = vld [vmem:[#allocation7 + $0x34] sm:$0xf]
    %v773 = vld [vmem:[#allocation7 + $0x38] sm:$0xf]
    %v774 = vld [vmem:[#allocation7 + $0x3c] sm:$0xf]
    %v791 = vunpack.c.l.b16 %v759
    %v792 = vunpack.c.l.b16 %v760
    %v793 = vunpack.c.l.b16 %v761
    %v794 = vunpack.c.l.b16 %v762
    %v795 = vunpack.c.l.b16 %v763
    %v796 = vunpack.c.l.b16 %v764
    %v797 = vunpack.c.l.b16 %v765
    %v798 = vunpack.c.l.b16 %v766
    %v799 = vunpack.c.l.b16 %v767
    %v800 = vunpack.c.l.b16 %v768
    %v801 = vunpack.c.l.b16 %v769
    %v802 = vunpack.c.l.b16 %v770
    %v803 = vunpack.c.l.b16 %v771
    %v804 = vunpack.c.l.b16 %v772
    %v805 = vunpack.c.l.b16 %v773
    %v806 = vunpack.c.l.b16 %v774
    %v807 = vpack.c.b16 %v792, %v791
    %v808 = vpack.c.b16 %v794, %v793
    %v809 = vpack.c.b16 %v796, %v795
    %v810 = vpack.c.b16 %v798, %v797
    %v811 = vpack.c.b16 %v800, %v799
    %v812 = vpack.c.b16 %v802, %v801
    %v813 = vpack.c.b16 %v804, %v803
    %v814 = vpack.c.b16 %v806, %v805
    %823 = vmatpush.bf16.msra.mxu0 %v814
    %824 = vmatpush.bf16.msra.mxu0 %v813
    %825 = vmatpush.bf16.msra.mxu0 %v812
    %826 = vmatpush.bf16.msra.mxu0 %v811
    %827 = vmatpush.bf16.msra.mxu0 %v810
    %828 = vmatpush.bf16.msra.mxu0 %v809
    %829 = vmatpush.bf16.msra.mxu0 %v808
    %830 = vmatpush.bf16.msra.mxu0 %v807
    %831 = vmatmul.bf16.gmra.mxu0 0
    %v832 = vpop.f32.mrf.mxu0
    %v833 = vadd.f32 0.0, %v832
    %v834 = vpop.f32.mrf.mxu0
    %835 = vdwg.mxu0
    %v836 = vadd.f32 %v756, %v833
    %v837 = vtanh.pop %v836
    %v838 = vmul.f32 %v837, 0.125
    %v839 = vadd.f32 %v838, 0.0
    %v840 = vpack.c.bf16 %v839, %v839
    %841 = vmatpush.bf16.msra.mxu0 %v814
    %842 = vmatpush.bf16.msra.mxu0 %v813
    %843 = vmatpush.bf16.msra.mxu0 %v812
    %844 = vmatpush.bf16.msra.mxu0 %v811
    %845 = vmatpush.bf16.msra.mxu0 %v810
    %846 = vmatpush.bf16.msra.mxu0 %v809
    %847 = vmatpush.bf16.msra.mxu0 %v808
    %848 = vmatpush.bf16.msra.mxu0 %v807
    %849 = vmatmul.bf16.gmra.mxu0 %v840
    %v850 = vpop.f32.mrf.mxu0
    %v851 = vadd.f32 0.0, %v850
    %v852 = vpop.f32.mrf.mxu0
    %853 = vdwg.mxu0
    %v854 = vadd.f32 %v756, %v851
    %v855 = vmul.f32 %v839, 0.875
    %v856 = vtanh.pop %v854
    %v857 = vmul.f32 %v856, 0.125
    %v858 = vadd.f32 %v855, %v857
    %v859 = vpack.c.bf16 %v858, %v858
    %860 = vmatpush.bf16.msra.mxu0 %v814
    %861 = vmatpush.bf16.msra.mxu0 %v813
    %862 = vmatpush.bf16.msra.mxu0 %v812
    %863 = vmatpush.bf16.msra.mxu0 %v811
    %864 = vmatpush.bf16.msra.mxu0 %v810
    %865 = vmatpush.bf16.msra.mxu0 %v809
    %866 = vmatpush.bf16.msra.mxu0 %v808
    %867 = vmatpush.bf16.msra.mxu0 %v807
    %868 = vmatmul.bf16.gmra.mxu0 %v859
    %v869 = vpop.f32.mrf.mxu0
    %v870 = vadd.f32 0.0, %v869
    %v871 = vpop.f32.mrf.mxu0
    %872 = vdwg.mxu0
    %v873 = vadd.f32 %v756, %v870
    %v874 = vmul.f32 %v858, 0.875
    %v875 = vtanh.pop %v873
    %v876 = vmul.f32 %v875, 0.125
    %v877 = vadd.f32 %v874, %v876
    %v878 = vpack.c.bf16 %v877, %v877
    %879 = vmatpush.bf16.msra.mxu0 %v814
    %880 = vmatpush.bf16.msra.mxu0 %v813
    %881 = vmatpush.bf16.msra.mxu0 %v812
    %882 = vmatpush.bf16.msra.mxu0 %v811
    %883 = vmatpush.bf16.msra.mxu0 %v810
    %884 = vmatpush.bf16.msra.mxu0 %v809
    %885 = vmatpush.bf16.msra.mxu0 %v808
    %886 = vmatpush.bf16.msra.mxu0 %v807
    %887 = vmatmul.bf16.gmra.mxu0 %v878
    %v888 = vpop.f32.mrf.mxu0
    %v889 = vadd.f32 0.0, %v888
    %v890 = vpop.f32.mrf.mxu0
    %891 = vdwg.mxu0
    %v892 = vadd.f32 %v756, %v889
    %v893 = vmul.f32 %v877, 0.875
    %v894 = vtanh.pop %v892
    %v895 = vmul.f32 %v894, 0.125
    %v896 = vadd.f32 %v893, %v895
    %v897 = vpack.c.bf16 %v896, %v896
    %898 = vmatpush.bf16.msra.mxu0 %v814
    %899 = vmatpush.bf16.msra.mxu0 %v813
    %900 = vmatpush.bf16.msra.mxu0 %v812
    %901 = vmatpush.bf16.msra.mxu0 %v811
    %902 = vmatpush.bf16.msra.mxu0 %v810
    %903 = vmatpush.bf16.msra.mxu0 %v809
    %904 = vmatpush.bf16.msra.mxu0 %v808
    %905 = vmatpush.bf16.msra.mxu0 %v807
    %906 = vmatmul.bf16.gmra.mxu0 %v897
    %v907 = vpop.f32.mrf.mxu0
    %v908 = vadd.f32 0.0, %v907
    %v909 = vpop.f32.mrf.mxu0
    %910 = vdwg.mxu0
    %v911 = vadd.f32 %v756, %v908
    %v912 = vmul.f32 %v896, 0.875
    %v913 = vtanh.pop %v911
    %v914 = vmul.f32 %v913, 0.125
    %v915 = vadd.f32 %v912, %v914
    %v916 = vpack.c.bf16 %v915, %v915
    %917 = vmatpush.bf16.msra.mxu0 %v814
    %918 = vmatpush.bf16.msra.mxu0 %v813
    %919 = vmatpush.bf16.msra.mxu0 %v812
    %920 = vmatpush.bf16.msra.mxu0 %v811
    %921 = vmatpush.bf16.msra.mxu0 %v810
    %922 = vmatpush.bf16.msra.mxu0 %v809
    %923 = vmatpush.bf16.msra.mxu0 %v808
    %924 = vmatpush.bf16.msra.mxu0 %v807
    %925 = vmatmul.bf16.gmra.mxu0 %v916
    %v926 = vpop.f32.mrf.mxu0
    %v927 = vadd.f32 0.0, %v926
    %v928 = vpop.f32.mrf.mxu0
    %929 = vdwg.mxu0
    %v930 = vadd.f32 %v756, %v927
    %v931 = vmul.f32 %v915, 0.875
    %v932 = vtanh.pop %v930
    %v933 = vmul.f32 %v932, 0.125
    %v934 = vadd.f32 %v931, %v933
    %v935 = vpack.c.bf16 %v934, %v934
    %936 = vmatpush.bf16.msra.mxu0 %v814
    %937 = vmatpush.bf16.msra.mxu0 %v813
    %938 = vmatpush.bf16.msra.mxu0 %v812
    %939 = vmatpush.bf16.msra.mxu0 %v811
    %940 = vmatpush.bf16.msra.mxu0 %v810
    %941 = vmatpush.bf16.msra.mxu0 %v809
    %942 = vmatpush.bf16.msra.mxu0 %v808
    %943 = vmatpush.bf16.msra.mxu0 %v807
    %944 = vmatmul.bf16.gmra.mxu0 %v935
    %v945 = vpop.f32.mrf.mxu0
    %v946 = vadd.f32 0.0, %v945
    %v947 = vpop.f32.mrf.mxu0
    %948 = vdwg.mxu0
    %v949 = vadd.f32 %v756, %v946
    %v950 = vmul.f32 %v934, 0.875
    %v951 = vtanh.pop %v949
    %v952 = vmul.f32 %v951, 0.125
    %v953 = vadd.f32 %v950, %v952
    %v954 = vpack.c.bf16 %v953, %v953
    %955 = vmatpush.bf16.msra.mxu0 %v814
    %956 = vmatpush.bf16.msra.mxu0 %v813
    %957 = vmatpush.bf16.msra.mxu0 %v812
    %958 = vmatpush.bf16.msra.mxu0 %v811
    %959 = vmatpush.bf16.msra.mxu0 %v810
    %960 = vmatpush.bf16.msra.mxu0 %v809
    %961 = vmatpush.bf16.msra.mxu0 %v808
    %962 = vmatpush.bf16.msra.mxu0 %v807
    %963 = vmatmul.bf16.gmra.mxu0 %v954
    %v964 = vpop.f32.mrf.mxu0
    %v965 = vadd.f32 0.0, %v964
    %v966 = vpop.f32.mrf.mxu0
    %967 = vdwg.mxu0
    %v968 = vadd.f32 %v756, %v965
    %v969 = vmul.f32 %v953, 0.875
    %v970 = vtanh.pop %v968
    %v971 = vmul.f32 %v970, 0.125
    %v972 = vadd.f32 %v969, %v971
    %v973 = vpack.c.bf16 %v972, %v972
    %v974 = vld [vmem:[#allocation8] sm:$0xf]
    %v975 = vld [vmem:[#allocation8 + $0x4] sm:$0xf]
    %v976 = vld [vmem:[#allocation8 + $0x8] sm:$0xf]
    %v977 = vld [vmem:[#allocation8 + $0xc] sm:$0xf]
    %v978 = vld [vmem:[#allocation8 + $0x10] sm:$0xf]
    %v979 = vld [vmem:[#allocation8 + $0x14] sm:$0xf]
    %v980 = vld [vmem:[#allocation8 + $0x18] sm:$0xf]
    %v981 = vld [vmem:[#allocation8 + $0x1c] sm:$0xf]
    %v982 = vld [vmem:[#allocation8 + $0x20] sm:$0xf]
    %v983 = vld [vmem:[#allocation8 + $0x24] sm:$0xf]
    %v984 = vld [vmem:[#allocation8 + $0x28] sm:$0xf]
    %v985 = vld [vmem:[#allocation8 + $0x2c] sm:$0xf]
    %v986 = vld [vmem:[#allocation8 + $0x30] sm:$0xf]
    %v987 = vld [vmem:[#allocation8 + $0x34] sm:$0xf]
    %v988 = vld [vmem:[#allocation8 + $0x38] sm:$0xf]
    %v989 = vld [vmem:[#allocation8 + $0x3c] sm:$0xf]
    %v990 = vld [vmem:[%s5] sm:$0x1]
    %v992 = vperm.slane %v990, 0
    %v1010 = vunpack.c.l.b16 %v974
    %v1011 = vunpack.c.l.b16 %v975
    %v1012 = vunpack.c.l.b16 %v976
    %v1013 = vunpack.c.l.b16 %v977
    %v1014 = vunpack.c.l.b16 %v978
    %v1015 = vunpack.c.l.b16 %v979
    %v1016 = vunpack.c.l.b16 %v980
    %v1017 = vunpack.c.l.b16 %v981
    %v1018 = vunpack.c.l.b16 %v982
    %v1019 = vunpack.c.l.b16 %v983
    %v1020 = vunpack.c.l.b16 %v984
    %v1021 = vunpack.c.l.b16 %v985
    %v1022 = vunpack.c.l.b16 %v986
    %v1023 = vunpack.c.l.b16 %v987
    %v1024 = vunpack.c.l.b16 %v988
    %v1025 = vunpack.c.l.b16 %v989
    %v1026 = vpack.c.b16 %v1011, %v1010
    %v1027 = vpack.c.b16 %v1013, %v1012
    %v1028 = vpack.c.b16 %v1015, %v1014
    %v1029 = vpack.c.b16 %v1017, %v1016
    %v1030 = vpack.c.b16 %v1019, %v1018
    %v1031 = vpack.c.b16 %v1021, %v1020
    %v1032 = vpack.c.b16 %v1023, %v1022
    %v1033 = vpack.c.b16 %v1025, %v1024
    %1042 = vmatpush.bf16.msra.mxu0 %v1033
    %1043 = vmatpush.bf16.msra.mxu0 %v1032
    %1044 = vmatpush.bf16.msra.mxu0 %v1031
    %1045 = vmatpush.bf16.msra.mxu0 %v1030
    %1046 = vmatpush.bf16.msra.mxu0 %v1029
    %1047 = vmatpush.bf16.msra.mxu0 %v1028
    %1048 = vmatpush.bf16.msra.mxu0 %v1027
    %1049 = vmatpush.bf16.msra.mxu0 %v1026
    %1050 = vmatmul.bf16.gmra.mxu0 %v973
    %v1051 = vpop.f32.mrf.mxu0
    %v1052 = vadd.f32 %v992, %v1051
    %v1053 = vpop.f32.mrf.mxu0
    %1054 = vdwg.mxu0
    %v1055 = vmax.f32 %v1052, 0.0
    %v1056 = vpack.c.bf16 %v1055, %v1055
    %v1057 = vld [vmem:[#allocation10] sm:$0xf]
    %v1058 = vld [vmem:[#allocation10 + $0x4] sm:$0xf]
    %v1059 = vld [vmem:[#allocation10 + $0x8] sm:$0xf]
    %v1060 = vld [vmem:[#allocation10 + $0xc] sm:$0xf]
    %v1061 = vld [vmem:[#allocation10 + $0x10] sm:$0xf]
    %v1062 = vld [vmem:[#allocation10 + $0x14] sm:$0xf]
    %v1063 = vld [vmem:[#allocation10 + $0x18] sm:$0xf]
    %v1064 = vld [vmem:[#allocation10 + $0x1c] sm:$0xf]
    %v1065 = vld [vmem:[#allocation10 + $0x20] sm:$0xf]
    %v1066 = vld [vmem:[#allocation10 + $0x24] sm:$0xf]
    %v1067 = vld [vmem:[#allocation10 + $0x28] sm:$0xf]
    %v1068 = vld [vmem:[#allocation10 + $0x2c] sm:$0xf]
    %v1069 = vld [vmem:[#allocation10 + $0x30] sm:$0xf]
    %v1070 = vld [vmem:[#allocation10 + $0x34] sm:$0xf]
    %v1071 = vld [vmem:[#allocation10 + $0x38] sm:$0xf]
    %v1072 = vld [vmem:[#allocation10 + $0x3c] sm:$0xf]
    %v1073 = vld [vmem:[%s7] sm:$0x1]
    %v1075 = vperm.slane %v1073, 0
    %v1093 = vunpack.c.l.b16 %v1057
    %v1094 = vunpack.c.l.b16 %v1058
    %v1095 = vunpack.c.l.b16 %v1059
    %v1096 = vunpack.c.l.b16 %v1060
    %v1097 = vunpack.c.l.b16 %v1061
    %v1098 = vunpack.c.l.b16 %v1062
    %v1099 = vunpack.c.l.b16 %v1063
    %v1100 = vunpack.c.l.b16 %v1064
    %v1101 = vunpack.c.l.b16 %v1065
    %v1102 = vunpack.c.l.b16 %v1066
    %v1103 = vunpack.c.l.b16 %v1067
    %v1104 = vunpack.c.l.b16 %v1068
    %v1105 = vunpack.c.l.b16 %v1069
    %v1106 = vunpack.c.l.b16 %v1070
    %v1107 = vunpack.c.l.b16 %v1071
    %v1108 = vunpack.c.l.b16 %v1072
    %v1109 = vpack.c.b16 %v1094, %v1093
    %v1110 = vpack.c.b16 %v1096, %v1095
    %v1111 = vpack.c.b16 %v1098, %v1097
    %v1112 = vpack.c.b16 %v1100, %v1099
    %v1113 = vpack.c.b16 %v1102, %v1101
    %v1114 = vpack.c.b16 %v1104, %v1103
    %v1115 = vpack.c.b16 %v1106, %v1105
    %v1116 = vpack.c.b16 %v1108, %v1107
    %1125 = vmatpush.bf16.msra.mxu0 %v1116
    %1126 = vmatpush.bf16.msra.mxu0 %v1115
    %1127 = vmatpush.bf16.msra.mxu0 %v1114
    %1128 = vmatpush.bf16.msra.mxu0 %v1113
    %1129 = vmatpush.bf16.msra.mxu0 %v1112
    %1130 = vmatpush.bf16.msra.mxu0 %v1111
    %1131 = vmatpush.bf16.msra.mxu0 %v1110
    %1132 = vmatpush.bf16.msra.mxu0 %v1109
    %1133 = vmatmul.bf16.gmra.mxu0 %v1056
    %v1134 = vpop.f32.mrf.mxu0
    %v1135 = vadd.f32 %v1075, %v1134
    %v1136 = vpop.f32.mrf.mxu0
    %1137 = vdwg.mxu0
    %1138 = vst [vmem:[#allocation11] sm:$0xff] %v1135
    // Predicated region
    $region54: #{tpu_custom_call.1} parent=1 // pred_check
      _
    $region55: #{tpu_custom_call.1} parent=1 // pred_check_branch
      %1140 = sbr.rel (0) target = $region57
    $region56: #{tpu_custom_call.1} parent=1 // pred_region
      %1142 = vsyncadd [#allocation4], 0
      %s1144 = sshll.u32 [#allocation11], 4
      %s1145 = int_to_ptr.vmem [resolvable:$true] %s1144
      %s1146 = sshll.u32 %s8, 4
      %s1147 = int_to_ptr.hbm [resolvable:$true] %s1146
      %1149 = dma.vmem_to_hbm [thread:$0]  %s1145, 128, %s1147, [#allocation4]
    $region57: #{tpu_custom_call.1} parent=1 // pred_fallthru
      _
    // Predicated region
    $region58: #{tpu_custom_call.1} parent=1 // pred_check
      _
    $region59: #{tpu_custom_call.1} parent=1 // pred_check_branch
      %1151 = sbr.rel (0) target = $region61
    $region60: #{tpu_custom_call.1} parent=1 // pred_region
      %1153 = dma.done [#allocation4], 128
    $region61: #{tpu_custom_call.1} parent=1 // pred_fallthru
      _
    %1154 = vsyncpa [#allocation3], 1
    %1155 = vsyncpa [#allocation6], 1
    %1156 = vsyncpa [#allocation9], 1
    %1157 = vsyncpa [#allocation4], 1

</llo_original>
